<compile_context>
chip_gen: v7x
topology: tpu7x:2x2x1
jax: 0.10.0
libtpu: 0.0.40
codegen_flags: <defaults>
</compile_context>

<pallas_src>
import math

import jax
import jax.numpy as jnp
from jax.experimental import pallas as pl
from jax.experimental.pallas import tpu as pltpu


# ---------------------------------------------------------------------------
# Small helpers
# ---------------------------------------------------------------------------
def _round_up(x, m):
    return ((x + m - 1) // m) * m


def _vmem_limit_bytes():
    """Generation-aware scoped-VMEM limit (v7x: 64 MiB physical, v5e/v6e: 128)."""
    cap = 64 * 1024 * 1024
    try:
        info = pltpu.get_tpu_info()
        cap = int(getattr(info, "vmem_capacity_bytes", cap))
    except Exception:  # CPU/interpret or older runtime: stay conservative.
        pass
    return min((cap * 3) // 4, 100 * 1024 * 1024)


# ---------------------------------------------------------------------------
# Pallas kernels
# ---------------------------------------------------------------------------
def _patch_embed_kernel_resident(x_ref, w_ref, b_ref, o_ref):
    # x_ref: (tm, K) bf16   w_ref: (K, D) bf16 (VMEM-resident)
    # b_ref: (1, D) f32     o_ref: (tm, D)
    o_ref[...] = (
        jnp.dot(x_ref[...], w_ref[...], preferred_element_type=jnp.float32)
        + b_ref[...]
    ).astype(o_ref.dtype)


def _patch_embed_kernel_kreduce(x_ref, w_ref, b_ref, o_ref, acc_ref):
    # Fallback when the weight is too large to keep resident: reduce over K.
    k = pl.program_id(1)

    @pl.when(k == 0)
    def _init():
        acc_ref[...] = jnp.zeros_like(acc_ref)

    acc_ref[...] += jnp.dot(
        x_ref[...], w_ref[...], preferred_element_type=jnp.float32
    )

    @pl.when(k == pl.num_programs(1) - 1)
    def _finalize():
        o_ref[...] = (acc_ref[...] + b_ref[...]).astype(o_ref.dtype)


# ---------------------------------------------------------------------------
# Matmul + bias wrapper (the conv-as-patch-embedding hot path)
# ---------------------------------------------------------------------------
def patch_embed_matmul(
    patches,
    weight,
    bias,
    out_dtype=None,
    *,
    compute_dtype=jnp.bfloat16,
    max_tm=1024,
    resident_weight_limit=16 * 1024 * 1024,
):
    """patches: (M, K), weight: (K, D), bias: (D,) -> (M, D) in out_dtype.

    compute_dtype=jnp.float32 gives bitwise-closer parity with PyTorch's f32
    Conv3d at the cost of 2x input HBM traffic.
    """
    M, K = patches.shape
    Kw, D = weight.shape
    assert Kw == K
    if out_dtype is None:
        out_dtype = patches.dtype

    K_pad = _round_up(K, 128)
    D_pad = _round_up(D, 128)

    x = patches.astype(compute_dtype)
    w = weight.astype(compute_dtype)
    b = bias.astype(jnp.float32)
    if K_pad != K:  # zero rows/cols: mathematically a no-op, keeps MXU dense.
        x = jnp.pad(x, ((0, 0), (0, K_pad - K)))
        w = jnp.pad(w, ((0, K_pad - K), (0, 0)))
    if D_pad != D:
        w = jnp.pad(w, ((0, 0), (0, D_pad - D)))
        b = jnp.pad(b, (0, D_pad - D))
    b2 = b.reshape(1, D_pad)

    in_bytes = jnp.dtype(compute_dtype).itemsize
    out_bytes = jnp.dtype(out_dtype).itemsize
    vmem_limit = _vmem_limit_bytes()
    w_bytes = K_pad * D_pad * in_bytes

    def _pick_tm(per_row_bytes, fixed_bytes):
        budget = int((vmem_limit - fixed_bytes) * 0.8)
        tm = min(max_tm, max(16, budget // max(per_row_bytes, 1)))
        tm = max(16, (tm // 16) * 16)        # dense bf16 sublane packing
        tm = min(tm, _round_up(M, 16))
        # v7x megacore: ensure >= 2 M blocks when there is enough work.
        if M > 32 and pl.cdiv(M, tm) < 2:
            tm = max(16, _round_up(pl.cdiv(M, 2), 16))
        return tm

    if w_bytes <= resident_weight_limit:
        # --- primary path: weight + bias resident, 1-D grid over M ----------
        per_row = 2 * (K_pad * in_bytes + D_pad * out_bytes)  # dbl-buffered x/out
        tm = _pick_tm(per_row, w_bytes + 2 * D_pad * 4)
        nm = pl.cdiv(M, tm)

        out = pl.pallas_call(
            _patch_embed_kernel_resident,
            out_shape=jax.ShapeDtypeStruct((M, D_pad), out_dtype),
            grid=(nm,),
            in_specs=[
                pl.BlockSpec((tm, K_pad), lambda i: (i, 0)),
                pl.BlockSpec((K_pad, D_pad), lambda i: (0, 0)),  # resident
                pl.BlockSpec((1, D_pad), lambda i: (0, 0)),      # resident
            ],
            out_specs=pl.BlockSpec((tm, D_pad), lambda i: (i, 0)),
            compiler_params=pltpu.CompilerParams(
                dimension_semantics=("parallel",),
                allow_input_fusion=[True, True, True],
                vmem_limit_bytes=vmem_limit,
            ),
        )(x, w, b2)
    else:
        # --- fallback: K-reduction grid with f32 accumulator -----------------
        tk = 128
        tk_cap = max(128, (resident_weight_limit // (2 * D_pad * in_bytes)) // 128 * 128)
        t = 128
        while t <= min(K_pad, tk_cap):
            if K_pad % t == 0:
                tk = t
            t += 128
        per_row = 2 * tk * in_bytes + 2 * D_pad * out_bytes + D_pad * 4
        tm = _pick_tm(per_row, 2 * tk * D_pad * in_bytes + 2 * D_pad * 4)
        nm, nk = pl.cdiv(M, tm), K_pad // tk

        out = pl.pallas_call(
            _patch_embed_kernel_kreduce,
            out_shape=jax.ShapeDtypeStruct((M, D_pad), out_dtype),
            grid=(nm, nk),
            in_specs=[
                pl.BlockSpec((tm, tk), lambda i, k: (i, k)),
                pl.BlockSpec((tk, D_pad), lambda i, k: (k, 0)),
                pl.BlockSpec((1, D_pad), lambda i, k: (0, 0)),
            ],
            out_specs=pl.BlockSpec((tm, D_pad), lambda i, k: (i, 0)),
            scratch_shapes=[pltpu.VMEM((tm, D_pad), jnp.float32)],
            compiler_params=pltpu.CompilerParams(
                dimension_semantics=("parallel", "arbitrary"),
                allow_input_fusion=[True, True, True],
                vmem_limit_bytes=vmem_limit,
            ),
        )(x, w, b2)

    if D_pad != D:
        out = out[:, :D]   # pad columns; slicing fuses into the consumer
    return out


# ---------------------------------------------------------------------------
# DataEmbedding_u forward (TokenEmbedding) — layout glue in JAX, matmul in Pallas
# ---------------------------------------------------------------------------
def data_embedding_u_forward(
    x,
    conv_weight,
    conv_bias,
    t_patch_size,
    patch_size,
    *,
    compute_dtype=jnp.bfloat16,
    out_dtype=None,
):
    """
    x:           (N, c_in, T, H, W)        -- NCDHW, as fed to nn.Conv3d
    conv_weight: (d_model, c_in, tp, p, p) -- PyTorch Conv3d weight layout
    conv_bias:   (d_model,)
    returns:     (N, T'*H'*W', d_model),  T'=T//tp, H'=H//p, W'=W//p
    out_dtype defaults to x.dtype; pass jnp.bfloat16 for bf16-downstream models.
    # TODO(synk): the module's nn.Dropout(0.5) is defined but never applied in
    # forward(), so it is intentionally omitted here.
    """
    N, C, T, H, W = x.shape
    tp, p = t_patch_size, patch_size
    d_model = conv_weight.shape[0]
    Tp, Hp, Wp = T // tp, H // p, W // p
    K = C * tp * p * p
    M = N * Tp * Hp * Wp

    # Cast BEFORE the patchify transpose so that, if XLA materializes the
    # (M, K) staging buffer, it is bf16 (half the extra HBM pass); with
    # allow_input_fusion it may fuse into the pallas_call input DMA entirely.
    xc = x.astype(compute_dtype)
    xp = xc.reshape(N, C, Tp, tp, Hp, p, Wp, p)
    xp = jnp.transpose(xp, (0, 2, 4, 6, 1, 3, 5, 7))   # (N,T',H',W',C,tp,p,p)
    patches = xp.reshape(M, K)

    # Conv3d weight (d_model, C, tp, p, p) -> (K, d_model); contraction order
    # matches the channel-major patch flattening above.
    w_mat = conv_weight.reshape(d_model, K).T

    out = patch_embed_matmul(
        patches,
        w_mat,
        conv_bias,
        out_dtype if out_dtype is not None else x.dtype,
        compute_dtype=compute_dtype,
    )
    return out.reshape(N, Tp * Hp * Wp, d_model)


# ---------------------------------------------------------------------------
# Deterministic parameter init (mirrors kaiming_normal_ fan_in / leaky_relu)
# ---------------------------------------------------------------------------
def init_params(key, c_in, d_model, t_patch_size, patch_size):
    kw, kb = jax.random.split(key)
    fan_in = c_in * t_patch_size * patch_size * patch_size
    gain = math.sqrt(2.0)  # kaiming gain for leaky_relu with a=0
    std = gain / math.sqrt(fan_in)
    weight = std * jax.random.normal(
        kw, (d_model, c_in, t_patch_size, patch_size, patch_size), jnp.float32
    )
    bound = 1.0 / math.sqrt(fan_in)
    bias = jax.random.uniform(kb, (d_model,), jnp.float32, -bound, bound)
    return weight, bias


if __name__ == "__main__":
    # Small shapes consistent with the module's forward:
    #   N=2, c_in=4, T=8, H=W=16, t_patch_size=2, patch_size=4, d_model=32
    #   -> T'=4, H'=W'=4, M = 2*4*4*4 = 128, K = 4*2*4*4 = 128
    N, c_in, T, H, W = 2, 4, 8, 16, 16
    t_patch_size, patch_size, d_model = 2, 4, 32

    key = jax.random.PRNGKey(0)
    kx, kp = jax.random.split(key)
    x = jax.random.normal(kx, (N, c_in, T, H, W), jnp.float32)
    conv_weight, conv_bias = init_params(kp, c_in, d_model, t_patch_size, patch_size)

    out = data_embedding_u_forward(
        x, conv_weight, conv_bias, t_patch_size, patch_size
    )
    out = jax.block_until_ready(out)

    expected_tokens = (T // t_patch_size) * (H // patch_size) * (W // patch_size)
    assert out.shape == (N, expected_tokens, d_model), out.shape
    assert jnp.isfinite(out).all()

    # Reference 1: same math with inputs quantized to bf16 (what the kernel
    # sees) — should match to accumulation-order noise.
    def conv_ref(xf, wf):
        r = jax.lax.conv_general_dilated(
            xf, wf,
            window_strides=(t_patch_size, patch_size, patch_size),
            padding="VALID",
            dimension_numbers=("NCDHW", "OIDHW", "NCDHW"),
        ) + conv_bias.reshape(1, d_model, 1, 1, 1)
        r = r.reshape(N, d_model, T // t_patch_size, -1)          # flatten(3)
        return jnp.einsum("ncts->ntsc", r).reshape(N, -1, d_model)

    xq = x.astype(jnp.bfloat16).astype(jnp.float32)
    wq = conv_weight.astype(jnp.bfloat16).astype(jnp.float32)
    ref_bf16 = conv_ref(xq, wq)
    assert jnp.allclose(out, ref_bf16, atol=2e-3, rtol=2e-3)

    # Reference 2: full f32 conv — loose check (bf16 input quantization).
    ref_f32 = conv_ref(x, conv_weight)
    assert jnp.allclose(out, ref_f32, atol=5e-2, rtol=5e-2)

    print("KERNEL_OK")
</pallas_src>

<mosaic_0001>
module attributes {stable_mosaic.version = 11 : i64} {
  func.func @_patch_embed_kernel_resident(%arg0: i32, %arg1: memref<64x128xbf16, #tpu.memory_space<vmem>>, %arg2: memref<128x128xbf16, #tpu.memory_space<vmem>>, %arg3: memref<1x128xf32, #tpu.memory_space<vmem>>, %arg4: memref<64x128xf32, #tpu.memory_space<vmem>>) attributes {dimension_semantics = [#tpu.dimension_semantics<parallel>], iteration_bounds = array<i64: 2>, scalar_prefetch = 0 : i64, scratch_operands = 0 : i64, tpu.core_type = #tpu.core_type<tc>, window_params = [{transform_indices = @transform_0, window_bounds = array<i64: 64, 128>}, {pipeline_mode = #tpu.pipeline_mode<synchronous>, transform_indices = @transform_1, window_bounds = array<i64: 128, 128>}, {pipeline_mode = #tpu.pipeline_mode<synchronous>, transform_indices = @transform_2, window_bounds = array<i64: 1, 128>}, {transform_indices = @transform_3, window_bounds = array<i64: 64, 128>}]} {
    %c0 = arith.constant 0 : index
    %c0_0 = arith.constant 0 : index
    %0 = vector.load %arg1[%c0, %c0_0] : memref<64x128xbf16, #tpu.memory_space<vmem>>, vector<64x128xbf16>
    %c0_1 = arith.constant 0 : index
    %c0_2 = arith.constant 0 : index
    %1 = vector.load %arg2[%c0_1, %c0_2] : memref<128x128xbf16, #tpu.memory_space<vmem>>, vector<128x128xbf16>
    %cst = arith.constant dense<0.000000e+00> : vector<64x128xf32>
    %2 = tpu.matmul %0, %1, %cst {dimension_numbers = #tpu.dot_dimension_numbers<[1], [0], [0], [1], [0, 0, 1, 1], [], []>} : vector<64x128xbf16>, vector<128x128xbf16>, vector<64x128xf32> -> vector<64x128xf32>
    %c0_3 = arith.constant 0 : index
    %c0_4 = arith.constant 0 : index
    %3 = vector.load %arg3[%c0_3, %c0_4] : memref<1x128xf32, #tpu.memory_space<vmem>>, vector<1x128xf32>
    %4 = vector.broadcast %3 : vector<1x128xf32> to vector<64x128xf32>
    %5 = arith.addf %2, %4 : vector<64x128xf32>
    %c0_5 = arith.constant 0 : index
    %c0_6 = arith.constant 0 : index
    %6 = vector.load %arg4[%c0_5, %c0_6] : memref<64x128xf32, #tpu.memory_space<vmem>>, vector<64x128xf32>
    tpu.vector_store %arg4[%c0_5, %c0_6], %5 {strides = array<i32>} : memref<64x128xf32, #tpu.memory_space<vmem>>, vector<64x128xf32>,
    return
  }
  func.func @transform_0(%arg0: i32) -> (i32, i32) {
    %c0_i32 = arith.constant 0 : i32
    %c0_i32_0 = arith.constant 0 : i32
    return %arg0, %c0_i32 : i32, i32
  }
  func.func @transform_1(%arg0: i32) -> (i32, i32) {
    %c0_i32 = arith.constant 0 : i32
    %c0_i32_0 = arith.constant 0 : i32
    %c0_i32_1 = arith.constant 0 : i32
    return %c0_i32, %c0_i32_0 : i32, i32
  }
  func.func @transform_2(%arg0: i32) -> (i32, i32) {
    %c0_i32 = arith.constant 0 : i32
    %c0_i32_0 = arith.constant 0 : i32
    %c0_i32_1 = arith.constant 0 : i32
    return %c0_i32, %c0_i32_0 : i32, i32
  }
  func.func @transform_3(%arg0: i32) -> (i32, i32) {
    %c0_i32 = arith.constant 0 : i32
    %c0_i32_0 = arith.constant 0 : i32
    return %arg0, %c0_i32 : i32, i32
  }
}

</mosaic_0001>

<llo_original>
// kernel: tpu_custom_call.1
$region0: #{tpu_custom_call.1}
  #allocation0 [shape = 'u32[]', space=smem, size = 0x4, offset = 0x4, fixed_abs, tag = 'smem constant byte address 0x4 - core index']
  #allocation1 [shape = 'u32[144,128]{1,0:T(1,128)}', space=vmem, size = 0x12000, scoped, tag = 'internal scratch']
  %s0 = inlined_call_operand.hbm [shape: bf16[128,128], index: 0, kind: input, shape index: {}]
  %s1 = inlined_call_operand.hbm [shape: bf16[128,128], index: 1, kind: input, shape index: {}]
  %s2 = inlined_call_operand.vmem [shape: f32[1,128], index: 2, kind: input, shape index: {}]
  %s3 = inlined_call_operand.hbm [shape: f32[128,128], index: 3, kind: output, shape index: {}]
  %s4 = sld [smem:[#allocation0]]
  $region53: #{tpu_custom_call.1} parent=0
    _
  %s6 = ssub.s32 1, %s4
  %s7 = scalar_select 0, %s6, %s4
  $region1: #{tpu_custom_call.1} parent=0
    #allocation2 [shape = 'u8[32768]{0}', space=vmem, size = 0x8000, scoped, tag = 'input window, operand 0']
    #allocation3 [shape = 's32[2]{0}', space=sflag, size = 0x8, scoped, tag = 'scoped memory for tpu_custom_call.1']
    #allocation4 [shape = 's32[2]{0}', space=sflag, size = 0x8, scoped, tag = 'scoped memory for tpu_custom_call.1']
    #allocation5 [shape = 'u8[32768]{0}', space=vmem, size = 0x8000, scoped, tag = 'input window, operand 1, single buffered']
    #allocation6 [shape = 's32[1]{0}', space=sflag, size = 0x4, scoped, tag = 'scoped memory for tpu_custom_call.1']
    #allocation7 [shape = 'u8[65536]{0}', space=vmem, size = 0x10000, scoped, tag = 'output window, operand 0']
    %8 = vsyncpa [#allocation3], 0
    %s9 = scalar_lea.sflag [#allocation3], 1
    %10 = vsyncpa %s9, 0
    %11 = vsyncpa [#allocation6], 0
    %12 = vsyncpa [#allocation4], 0
    %s13 = scalar_lea.sflag [#allocation4], 1
    %14 = vsyncpa %s13, 0
    loop: start=0, step=1, limit=4
    $region2: #{tpu_custom_call.1} parent=1 // loop_pre_header
      _
    $region3: #{tpu_custom_call.1} parent=1 // loop_header
      %s16 = sphi 0, %s20
      %p17 = scmp.ge.s32.totalorder %s16, 4
      %s26 = sphi 0, %s28
      %s29 = sphi 0, %s26
      %s30 = sphi 0, %s29
      %s46 = sphi 0, %s30
      %s50 = sphi 0, %s50
      %s52 = sphi 0, %s50
      %s53 = sphi 0, %s52
      %s67 = sphi 0, %s53
      %s71 = sphi 0, %s71
      %s73 = sphi 0, %s71
      %s74 = sphi 0, %s73
      %s88 = sphi 0, %s74
      %s94 = sphi 0, %s96
      %s97 = sphi 0, %s94
      %s98 = sphi 0, %s97
      %s114 = sphi 0, %s98
    $region4: #{tpu_custom_call.1} parent=1 // loop_header_branch
      %19 = sbr.rel (%p17) target = $region8
    $region5: #{tpu_custom_call.1} parent=1 // loop_body
      %s21 = ssub.s32 %s16, 1
      %s22 = ssub.s32 %s16, 2
      %s23 = sadd.s32 %s16, 1
      %s24 = ssub.s32 %s16, %s23
      %p25 = scmp.eq.s32.totalorder %s24, 0
      %s27 = sadd.s32 %s26, 1
      %s28 = scalar_select %p25, %s26, %s27
      %p31 = pneg %p25
      %p32 = scmp.eq.s32.totalorder %s16, 1
      %p33 = por %p31, %p32
      %p34 = scmp.ne.s32.totalorder %s26, %s29
      %p35 = scmp.eq.s32.totalorder %s16, 0
      %p36 = por %p34, %p35
      %p37 = scmp.ne.s32.totalorder %s26, %s29
      %p38 = scmp.eq.s32.totalorder %s21, 1
      %p39 = por %p37, %p38
      %p40 = scmp.ne.s32.totalorder %s29, %s30
      %p41 = scmp.eq.s32.totalorder %s21, 0
      %p42 = por %p40, %p41
      %p43 = scmp.ne.s32.totalorder %s29, %s30
      %p44 = scmp.eq.s32.totalorder %s22, 1
      %p45 = por %p43, %p44
      %p47 = scmp.ne.s32.totalorder %s30, %s46
      %p48 = scmp.eq.s32.totalorder %s22, 0
      %p49 = por %p47, %p48
      %s51 = sadd.s32 %s50, 1
      %p54 = scmp.eq.s32.totalorder %s16, 1
      %p55 = scmp.ne.s32.totalorder %s50, %s52
      %p56 = scmp.eq.s32.totalorder %s16, 0
      %p57 = por %p55, %p56
      %p58 = scmp.ne.s32.totalorder %s50, %s52
      %p59 = scmp.eq.s32.totalorder %s21, 1
      %p60 = por %p58, %p59
      %p61 = scmp.ne.s32.totalorder %s52, %s53
      %p62 = scmp.eq.s32.totalorder %s21, 0
      %p63 = por %p61, %p62
      %p64 = scmp.ne.s32.totalorder %s52, %s53
      %p65 = scmp.eq.s32.totalorder %s22, 1
      %p66 = por %p64, %p65
      %p68 = scmp.ne.s32.totalorder %s53, %s67
      %p69 = scmp.eq.s32.totalorder %s22, 0
      %p70 = por %p68, %p69
      %s72 = sadd.s32 %s71, 1
      %p75 = scmp.eq.s32.totalorder %s16, 1
      %p76 = scmp.ne.s32.totalorder %s71, %s73
      %p77 = scmp.eq.s32.totalorder %s16, 0
      %p78 = por %p76, %p77
      %p79 = scmp.ne.s32.totalorder %s71, %s73
      %p80 = scmp.eq.s32.totalorder %s21, 1
      %p81 = por %p79, %p80
      %p82 = scmp.ne.s32.totalorder %s73, %s74
      %p83 = scmp.eq.s32.totalorder %s21, 0
      %p84 = por %p82, %p83
      %p85 = scmp.ne.s32.totalorder %s73, %s74
      %p86 = scmp.eq.s32.totalorder %s22, 1
      %p87 = por %p85, %p86
      %p89 = scmp.ne.s32.totalorder %s74, %s88
      %p90 = scmp.eq.s32.totalorder %s22, 0
      %p91 = por %p89, %p90
      %s92 = ssub.s32 %s16, %s23
      %p93 = scmp.eq.s32.totalorder %s92, 0
      %s95 = sadd.s32 %s94, 1
      %s96 = scalar_select %p93, %s94, %s95
      %p99 = pneg %p93
      %p100 = scmp.eq.s32.totalorder %s16, 1
      %p101 = por %p99, %p100
      %p102 = scmp.ne.s32.totalorder %s94, %s97
      %p103 = scmp.eq.s32.totalorder %s16, 0
      %p104 = por %p102, %p103
      %p105 = scmp.ne.s32.totalorder %s94, %s97
      %p106 = scmp.eq.s32.totalorder %s21, 1
      %p107 = por %p105, %p106
      %p108 = scmp.ne.s32.totalorder %s97, %s98
      %p109 = scmp.eq.s32.totalorder %s21, 0
      %p110 = por %p108, %p109
      %p111 = scmp.ne.s32.totalorder %s97, %s98
      %p112 = scmp.eq.s32.totalorder %s22, 1
      %p113 = por %p111, %p112
      %p115 = scmp.ne.s32.totalorder %s98, %s114
      %p116 = scmp.eq.s32.totalorder %s22, 0
      %p117 = por %p115, %p116
      %p118 = scmp.le.s32.totalorder 1, %s16
      %p119 = scmp.lt.s32.totalorder %s16, 3
      %p120 = pnand %p118, %p119
      %p121 = pneg %p120
      // Predicated region
      $region9: #{tpu_custom_call.1} parent=5 // pred_check
        _
      $region10: #{tpu_custom_call.1} parent=5 // pred_check_branch
        %123 = sbr.rel (%p120) target = $region12
      $region11: #{tpu_custom_call.1} parent=5 // pred_region
        %s124 = ssub.s32 %s16, 1
        // Predicated region
        $region13: #{tpu_custom_call.1} parent=11 // pred_check
          %p125 = pneg %p63
        $region14: #{tpu_custom_call.1} parent=11 // pred_check_branch
          %127 = sbr.rel (%p125) target = $region16
        $region15: #{tpu_custom_call.1} parent=11 // pred_region
          %s129 = ssub.s32 1024, 1024
          %130 = vsyncadd [#allocation6], %s129
          %s131 = sshll.u32 [#allocation5], 4
          %s132 = int_to_ptr.vmem [resolvable:$true] %s131
          %137 = dma.hbm_to_vmem [thread:$0]  %s1, 1024, %s132, [#allocation6], 64, 64, 4
        $region16: #{tpu_custom_call.1} parent=11 // pred_fallthru
          _
        // Predicated region
        $region17: #{tpu_custom_call.1} parent=11 // pred_check
          %p138 = pneg %p84
        $region18: #{tpu_custom_call.1} parent=11 // pred_check_branch
          %140 = sbr.rel (%p138) target = $region20
        $region19: #{tpu_custom_call.1} parent=11 // pred_region
          _
        $region20: #{tpu_custom_call.1} parent=11 // pred_fallthru
          _
      $region12: #{tpu_custom_call.1} parent=5 // pred_fallthru
        _
      %p141 = scmp.lt.s32.totalorder %s16, 2
      // Predicated region
      $region21: #{tpu_custom_call.1} parent=5 // pred_check
        %p142 = pneg %p141
      $region22: #{tpu_custom_call.1} parent=5 // pred_check_branch
        %144 = sbr.rel (%p142) target = $region24
      $region23: #{tpu_custom_call.1} parent=5 // pred_region
        // Predicated region
        $region25: #{tpu_custom_call.1} parent=23 // pred_check
          %p145 = pneg %p36
        $region26: #{tpu_custom_call.1} parent=23 // pred_check_branch
          %147 = sbr.rel (%p145) target = $region28
        $region27: #{tpu_custom_call.1} parent=23 // pred_region
          %s148 = sand.u32 %s26, 1
          %s149 = scalar_lea.sflag [#allocation3], %s148
          %s150 = sand.u32 %s26, 1
          %s151 = smul.addr %s150, 32
          %s152 = scalar_lea.vmem [#allocation2], %s151
          %s153 = smul.u32 8, %s16
          %s155 = ssub.s32 512, 512
          %156 = vsyncadd %s149, %s155
          %s157 = smul.addr %s153, 64
          %s158 = scalar_lea.hbm %s0, %s157
          %s159 = sshll.u32 %s152, 4
          %s160 = int_to_ptr.vmem [resolvable:$true] %s159
          %165 = dma.hbm_to_vmem [thread:$0]  %s158, 512, %s160, %s149, 64, 64, 4
        $region28: #{tpu_custom_call.1} parent=23 // pred_fallthru
          _
      $region24: #{tpu_custom_call.1} parent=5 // pred_fallthru
        _
      %p166 = scmp.le.s32.totalorder 1, %s16
      %p167 = scmp.lt.s32.totalorder %s16, 3
      %p168 = pnand %p166, %p167
      %p169 = pneg %p168
      // Predicated region
      $region29: #{tpu_custom_call.1} parent=5 // pred_check
        _
      $region30: #{tpu_custom_call.1} parent=5 // pred_check_branch
        %171 = sbr.rel (%p168) target = $region32
      $region31: #{tpu_custom_call.1} parent=5 // pred_region
        %s172 = ssub.s32 %s16, 1
        %s173 = sand.u32 %s29, 1
        %s174 = scalar_lea.sflag [#allocation3], %s173
        %s175 = sand.u32 %s29, 1
        %s176 = smul.addr %s175, 32
        %s177 = scalar_lea.vmem [#allocation2], %s176
        // Predicated region
        $region33: #{tpu_custom_call.1} parent=31 // pred_check
          %p178 = pneg %p42
        $region34: #{tpu_custom_call.1} parent=31 // pred_check_branch
          %180 = sbr.rel (%p178) target = $region36
        $region35: #{tpu_custom_call.1} parent=31 // pred_region
          %181 = dma.done %s174, 512
        $region36: #{tpu_custom_call.1} parent=31 // pred_fallthru
          _
        // Predicated region
        $region37: #{tpu_custom_call.1} parent=31 // pred_check
          %p182 = pneg %p63
        $region38: #{tpu_custom_call.1} parent=31 // pred_check_branch
          %184 = sbr.rel (%p182) target = $region40
        $region39: #{tpu_custom_call.1} parent=31 // pred_region
          %185 = dma.done [#allocation6], 1024
        $region40: #{tpu_custom_call.1} parent=31 // pred_fallthru
          _
        %s186 = sand.u32 %s29, 1
        %s187 = scalar_lea.sflag [#allocation3], %s186
        %s188 = sand.u32 %s29, 1
        %s189 = smul.addr %s188, 32
        %s190 = scalar_lea.vmem [#allocation2], %s189
        %p191 = pneg %p42
        %p192 = pneg %p39
        %p193 = pneg %p63
        %p194 = pneg %p60
        %p195 = pneg %p84
        %p196 = pneg %p81
        %p197 = pneg %p110
        %p198 = pneg %p107
        %s199 = sand.u32 %s97, 1
        %s200 = scalar_lea.sflag [#allocation4], %s199
        %s201 = sand.u32 %s97, 1
        %s202 = smul.addr %s201, 64
        %s203 = scalar_lea.vmem [#allocation7], %s202
        %s204 = smul.u32 8, %s21
        %s205 = smul.u32 8, %s21
        %v207 = vld [vmem:[%s177] sm:$0xf]
        %v208 = vld [vmem:[%s177 + $0x4] sm:$0xf]
        %v209 = vld [vmem:[%s177 + $0x8] sm:$0xf]
        %v210 = vld [vmem:[%s177 + $0xc] sm:$0xf]
        %v211 = vld [vmem:[%s177 + $0x10] sm:$0xf]
        %v212 = vld [vmem:[%s177 + $0x14] sm:$0xf]
        %v213 = vld [vmem:[%s177 + $0x18] sm:$0xf]
        %v214 = vld [vmem:[%s177 + $0x1c] sm:$0xf]
        %v215 = vld [vmem:[#allocation5] sm:$0xf]
        %v216 = vld [vmem:[#allocation5 + $0x4] sm:$0xf]
        %v217 = vld [vmem:[#allocation5 + $0x8] sm:$0xf]
        %v218 = vld [vmem:[#allocation5 + $0xc] sm:$0xf]
        %v219 = vld [vmem:[#allocation5 + $0x10] sm:$0xf]
        %v220 = vld [vmem:[#allocation5 + $0x14] sm:$0xf]
        %v221 = vld [vmem:[#allocation5 + $0x18] sm:$0xf]
        %v222 = vld [vmem:[#allocation5 + $0x1c] sm:$0xf]
        %v223 = vld [vmem:[#allocation5 + $0x20] sm:$0xf]
        %v224 = vld [vmem:[#allocation5 + $0x24] sm:$0xf]
        %v225 = vld [vmem:[#allocation5 + $0x28] sm:$0xf]
        %v226 = vld [vmem:[#allocation5 + $0x2c] sm:$0xf]
        %v227 = vld [vmem:[#allocation5 + $0x30] sm:$0xf]
        %v228 = vld [vmem:[#allocation5 + $0x34] sm:$0xf]
        %v229 = vld [vmem:[#allocation5 + $0x38] sm:$0xf]
        %v230 = vld [vmem:[#allocation5 + $0x3c] sm:$0xf]
        %v231 = vld [vmem:[%s2] sm:$0x1]
        %v233 = vlaneseq
        %v234 = vshrl.u32 %v233, 7
        %v235 = vsub.s32 0, %v234
        %v236 = vrot.slane %v231, %v235
        %v246 = vunpack.c.l.b16 %v207
        %v247 = vunpack.c.l.b16 %v208
        %v248 = vunpack.c.l.b16 %v209
        %v249 = vunpack.c.l.b16 %v210
        %v250 = vunpack.c.l.b16 %v211
        %v251 = vunpack.c.l.b16 %v212
        %v252 = vunpack.c.l.b16 %v213
        %v253 = vunpack.c.l.b16 %v214
        %v254 = vpack.c.b16 %v247, %v246
        %v255 = vpack.c.b16 %v249, %v248
        %v256 = vpack.c.b16 %v251, %v250
        %v257 = vpack.c.b16 %v253, %v252
        %v278 = vunpack.c.l.b16 %v215
        %v279 = vunpack.c.l.b16 %v216
        %v280 = vunpack.c.l.b16 %v217
        %v281 = vunpack.c.l.b16 %v218
        %v282 = vunpack.c.l.b16 %v219
        %v283 = vunpack.c.l.b16 %v220
        %v284 = vunpack.c.l.b16 %v221
        %v285 = vunpack.c.l.b16 %v222
        %v286 = vunpack.c.l.b16 %v223
        %v287 = vunpack.c.l.b16 %v224
        %v288 = vunpack.c.l.b16 %v225
        %v289 = vunpack.c.l.b16 %v226
        %v290 = vunpack.c.l.b16 %v227
        %v291 = vunpack.c.l.b16 %v228
        %v292 = vunpack.c.l.b16 %v229
        %v293 = vunpack.c.l.b16 %v230
        %v294 = vpack.c.b16 %v279, %v278
        %v295 = vpack.c.b16 %v281, %v280
        %v296 = vpack.c.b16 %v283, %v282
        %v297 = vpack.c.b16 %v285, %v284
        %v298 = vpack.c.b16 %v287, %v286
        %v299 = vpack.c.b16 %v289, %v288
        %v300 = vpack.c.b16 %v291, %v290
        %v301 = vpack.c.b16 %v293, %v292
        %310 = vmatprep.subr.bf16.mxu0 0
        %311 = vmatpush1.bf16.msra.mxu0 %v294
        %312 = vmatprep.subr.bf16.mxu0 0
        %313 = vmatpush1.bf16.msra.mxu0 %v295
        %314 = vmatprep.subr.bf16.mxu0 0
        %315 = vmatpush1.bf16.msra.mxu0 %v296
        %316 = vmatprep.subr.bf16.mxu0 0
        %317 = vmatpush1.bf16.msra.mxu0 %v297
        %318 = vmatprep.subr.bf16.mxu0 0
        %319 = vmatpush1.bf16.msra.mxu0 %v298
        %320 = vmatprep.subr.bf16.mxu0 0
        %321 = vmatpush1.bf16.msra.mxu0 %v299
        %322 = vmatprep.subr.bf16.mxu0 0
        %323 = vmatpush1.bf16.msra.mxu0 %v300
        %324 = vmatprep.subr.bf16.mxu0 0
        %325 = vmatpush1.bf16.msra.mxu0 %v301
        %326 = vmatprep.subr.bf16.mxu0 0
        %327 = vmatpush1.bf16.msra.mxu0 0
        %328 = vmatprep.subr.bf16.mxu0 0
        %329 = vmatpush1.bf16.msra.mxu0 0
        %330 = vmatprep.subr.bf16.mxu0 0
        %331 = vmatpush1.bf16.msra.mxu0 0
        %332 = vmatprep.subr.bf16.mxu0 0
        %333 = vmatpush1.bf16.msra.mxu0 0
        %334 = vmatprep.subr.bf16.mxu0 0
        %335 = vmatpush1.bf16.msra.mxu0 0
        %336 = vmatprep.subr.bf16.mxu0 0
        %337 = vmatpush1.bf16.msra.mxu0 0
        %338 = vmatprep.subr.bf16.mxu0 0
        %339 = vmatpush1.bf16.msra.mxu0 0
        %340 = vmatprep.subr.bf16.mxu0 0
        %341 = vmatpush1.bf16.msra.mxu0 0
        %342 = vmatprep.mubr.bf16.mxu0 0
        %343 = vmatmul.mubr.bf16.gmra.mrb[0].mxu0 %v254
        %v344 = vpop.f32.mrb[0].mxu0
        %v345 = vadd.f32 %v236, %v344
        %v346 = vpop.f32.mrb[0].mxu0
        %v347 = vpop.f32.mrb[0].mxu0
        %v348 = vadd.f32 %v236, %v347
        %v349 = vpop.f32.mrb[0].mxu0
        %350 = vmatprep.mubr.bf16.mxu0 0
        %351 = vmatmul.mubr.bf16.gmra.mrb[0].mxu0 %v255
        %v352 = vpop.f32.mrb[0].mxu0
        %v353 = vadd.f32 %v236, %v352
        %v354 = vpop.f32.mrb[0].mxu0
        %v355 = vpop.f32.mrb[0].mxu0
        %v356 = vadd.f32 %v236, %v355
        %v357 = vpop.f32.mrb[0].mxu0
        %358 = vmatprep.mubr.bf16.mxu0 0
        %359 = vmatmul.mubr.bf16.gmra.mrb[0].mxu0 %v256
        %v360 = vpop.f32.mrb[0].mxu0
        %v361 = vadd.f32 %v236, %v360
        %v362 = vpop.f32.mrb[0].mxu0
        %v363 = vpop.f32.mrb[0].mxu0
        %v364 = vadd.f32 %v236, %v363
        %v365 = vpop.f32.mrb[0].mxu0
        %366 = vmatprep.mubr.bf16.mxu0 0
        %367 = vmatmul.mubr.bf16.gmra.mrb[0].mxu0 %v257
        %v368 = vpop.f32.mrb[0].mxu0
        %v369 = vadd.f32 %v236, %v368
        %v370 = vpop.f32.mrb[0].mxu0
        %v371 = vpop.f32.mrb[0].mxu0
        %v372 = vadd.f32 %v236, %v371
        %v373 = vpop.f32.mrb[0].mxu0
        %374 = vdwg.mxu0
        %375 = vst [vmem:[%s203] sm:$0xff] %v345
        %376 = vst [vmem:[%s203 + $0x8] sm:$0xff] %v348
        %377 = vst [vmem:[%s203 + $0x10] sm:$0xff] %v353
        %378 = vst [vmem:[%s203 + $0x18] sm:$0xff] %v356
        %379 = vst [vmem:[%s203 + $0x20] sm:$0xff] %v361
        %380 = vst [vmem:[%s203 + $0x28] sm:$0xff] %v364
        %381 = vst [vmem:[%s203 + $0x30] sm:$0xff] %v369
        %382 = vst [vmem:[%s203 + $0x38] sm:$0xff] %v372
        %s383 = sand.u32 %s97, 1
        %s384 = scalar_lea.sflag [#allocation4], %s383
        %s385 = sand.u32 %s97, 1
        %s386 = smul.addr %s385, 64
        %s387 = scalar_lea.vmem [#allocation7], %s386
        // Predicated region
        $region41: #{tpu_custom_call.1} parent=31 // pred_check
          %p388 = pneg %p107
        $region42: #{tpu_custom_call.1} parent=31 // pred_check_branch
          %390 = sbr.rel (%p388) target = $region44
        $region43: #{tpu_custom_call.1} parent=31 // pred_region
          %s391 = smul.u32 8, %s21
          %s393 = ssub.s32 1024, 1024
          %394 = vsyncadd %s384, %s393
          %s395 = smul.addr %s391, 128
          %s396 = scalar_lea.hbm %s3, %s395
          %s397 = sshll.u32 %s387, 4
          %s398 = int_to_ptr.vmem [resolvable:$true] %s397
          %403 = dma.vmem_to_hbm [thread:$0]  %s398, 1024, %s396, %s384, 128, 128, 8
        $region44: #{tpu_custom_call.1} parent=31 // pred_fallthru
          _
      $region32: #{tpu_custom_call.1} parent=5 // pred_fallthru
        _
      %p404 = scmp.le.s32.totalorder 2, %s16
      // Predicated region
      $region45: #{tpu_custom_call.1} parent=5 // pred_check
        %p405 = pneg %p404
      $region46: #{tpu_custom_call.1} parent=5 // pred_check_branch
        %407 = sbr.rel (%p405) target = $region48
      $region47: #{tpu_custom_call.1} parent=5 // pred_region
        %s408 = ssub.s32 %s16, 2
        // Predicated region
        $region49: #{tpu_custom_call.1} parent=47 // pred_check
          %p409 = pneg %p113
        $region50: #{tpu_custom_call.1} parent=47 // pred_check_branch
          %411 = sbr.rel (%p409) target = $region52
        $region51: #{tpu_custom_call.1} parent=47 // pred_region
          %s412 = sand.u32 %s98, 1
          %s413 = scalar_lea.sflag [#allocation4], %s412
          %s414 = sand.u32 %s98, 1
          %s415 = smul.addr %s414, 64
          %s416 = scalar_lea.vmem [#allocation7], %s415
          %417 = dma.done %s413, 1024
        $region52: #{tpu_custom_call.1} parent=47 // pred_fallthru
          _
      $region48: #{tpu_custom_call.1} parent=5 // pred_fallthru
        _
    $region6: #{tpu_custom_call.1} parent=1 // loop_footer
      %s20 = sadd.s32 1, %s16
    $region7: #{tpu_custom_call.1} parent=1 // loop_footer_branch
      %15 = sbr.rel target = $region3
    $region8: #{tpu_custom_call.1} parent=1 // loop_exit
      _
    %418 = vsyncpa [#allocation3], 1
    %s419 = scalar_lea.sflag [#allocation3], 1
    %420 = vsyncpa %s419, 1
    %421 = vsyncpa [#allocation6], 1
    %422 = vsyncpa [#allocation4], 1
    %s423 = scalar_lea.sflag [#allocation4], 1
    %424 = vsyncpa %s423, 1

</llo_original>
